<compile_context>
chip_gen: v5e
topology: v5e:2x2
jax: 0.10.0
libtpu: 0.0.40
codegen_flags: <defaults>
</compile_context>

<pallas_src>
import math
import jax
import jax.numpy as jnp
from jax.experimental import pallas as pl
from jax.experimental.pallas import tpu as pltpu

N_HEADS = 8


def _dense_mat_emb3_kernel(x_ref, bias_ref, qmask_ref, hcols_ref,
                           wqkv_ref, bqkv_ref, wo_ref, bo_ref, o_ref):
    # x_ref:     [TB, S, 14]      input features
    # bias_ref:  [TB, 1, S]       additive key mask (0 = keep, -1e9 = masked)
    # qmask_ref: [NH*L, H]        head-block mask for stacked Q (scale folded in)
    # hcols_ref: [NH, H]          per-head output-column selector (0/1)
    # wqkv_ref:  [14, 3H], bqkv_ref: [1, 3H]   fused (W_in @ W_{q,k,v}) weights/biases
    # wo_ref:    [H, H],   bo_ref: [1, H]
    # o_ref:     [TB, L, H]       output (query rows 2: only)
    TB, S, F_in = x_ref.shape
    H = wo_ref.shape[0]
    L = S - 2

    # ---- fused input + QKV projection: one batched MXU matmul --------------------
    w_qkv = jnp.broadcast_to(wqkv_ref[...], (TB, F_in, 3 * H))
    qkv = jnp.einsum("bsf,bfh->bsh", x_ref[...], w_qkv,
                     preferred_element_type=jnp.float32)                   # [TB, S, 3H]
    qkv = qkv + bqkv_ref[...]

    q = qkv[:, 2:, 0:H]            # [TB, L, H]  only the L query rows we emit
    k = qkv[:, :, H:2 * H]         # [TB, S, H]
    v = qkv[:, :, 2 * H:3 * H]     # [TB, S, H]

    # ---- all heads with one batched score matmul ----------------------------------
    # q_stk[b, h*L + l, c] = q[b, l, c] / sqrt(dh)  if column c belongs to head h,
    # else 0.  Contracting the full H axis against K then gives exactly the
    # per-head scaled scores s[b, h*L + l, k] in a single MXU push.
    q_stk = jnp.concatenate([q] * N_HEADS, axis=1) * qmask_ref[...]        # [TB, NH*L, H]

    s = jnp.einsum("bmh,bkh->bmk", q_stk, k,
                   preferred_element_type=jnp.float32)                     # [TB, NH*L, S]
    s = s + bias_ref[...]                                                  # hoisted key-mask bias

    # softmax over keys; approx reciprocal runs on the otherwise-idle EUP slot
    s = s - jnp.max(s, axis=-1, keepdims=True)
    p = jnp.exp(s)
    p = p * pl.reciprocal(jnp.sum(p, axis=-1, keepdims=True), approx=True)

    # attention-weighted values for every (head, query) row in one batched matmul
    t = jnp.einsum("bmk,bkc->bmc", p, v,
                   preferred_element_type=jnp.float32)                     # [TB, NH*L, H]

    # ---- rebuild the concat-of-heads layout ----------------------------------------
    # concat[b, l, c] = t[b, (c // dh)*L + l, c].  Every matmul above already
    # covers all heads; this is only O(TB*L*H) VPU work on sublane-aligned
    # (multiples of L = 8) row blocks — no lane slicing, no concatenate, no matmul.
    concat = t[:, 0:L, :] * hcols_ref[0:1, :]
    for h in range(1, N_HEADS):
        concat = concat + t[:, h * L:(h + 1) * L, :] * hcols_ref[h:h + 1, :]

    # ---- output projection -----------------------------------------------------------
    w_o = jnp.broadcast_to(wo_ref[...], (TB, H, H))
    out = jnp.einsum("blh,bho->blo", concat, w_o,
                     preferred_element_type=jnp.float32) + bo_ref[...]     # [TB, L, H]

    # TODO(synk): with H < 128 this store is a masked (32-lane) vst; a lane-dense
    # [TB, L*H] output would need a minor-dim reshape whose Mosaic lowering is
    # shaky at these shapes, so the output stays a [TB, L, H] block (negligible).
    o_ref[...] = out.astype(o_ref.dtype)


def _pick_tb(B, max_tb=32):
    """Largest divisor of B <= max_tb that keeps >= 2 grid steps when B >= 2
    (so both v7x TensorCores get work)."""
    best = 1
    for d in range(1, min(B, max_tb) + 1):
        if B % d == 0 and (B == 1 or B // d >= 2):
            best = d
    return best


def dense_mat_emb3(point_dist_mat, point_masks, params, *, max_tb=32):
    """point_dist_mat: [B, S, 14] float, point_masks: [B, S-2] float."""
    B, S, F_in = point_dist_mat.shape
    H = params["W_in"].shape[1]
    L = S - 2
    assert H % N_HEADS == 0 and L > 0
    dh = H // N_HEADS

    # Fold the Linear(14, H) input projection into the QKV weights (exact algebra):
    #   q = (x W_in + b_in) W_q + b_q = x (W_in W_q) + (b_in W_q + b_q), same for k, v.
    W_in = params["W_in"].astype(jnp.float32)
    b_in = params["b_in"].astype(jnp.float32)

    def fold(w, b):
        return W_in @ w, b_in @ w + b

    W_xq, b_xq = fold(params["W_q"], params["b_q"])
    W_xk, b_xk = fold(params["W_k"], params["b_k"])
    W_xv, b_xv = fold(params["W_v"], params["b_v"])
    W_qkv = jnp.concatenate([W_xq, W_xk, W_xv], axis=1).astype(jnp.float32)   # [14, 3H]
    b_qkv = jnp.concatenate([b_xq, b_xk, b_xv], axis=1).astype(jnp.float32)   # [1, 3H]
    W_o = params["W_o"].astype(jnp.float32)
    b_o = params["b_o"].astype(jnp.float32)

    # F.pad(point_masks, (2, 0), value=1.0) -> [B, S]; converted to an additive
    # attention bias once, outside the kernel.
    ext_mask = jnp.concatenate(
        [jnp.ones((B, 2), jnp.float32), point_masks.astype(jnp.float32)], axis=1)
    neg_bias = ((1.0 - ext_mask) * (-1e9))[:, None, :]                        # [B, 1, S]

    # Head-block mask for the stacked-Q score matmul (1/sqrt(dh) folded in) and
    # per-head output-column selectors — computed once, grid-invariant inputs.
    row_head = jnp.arange(N_HEADS * L, dtype=jnp.int32) // L                  # [NH*L]
    col_head = jnp.arange(H, dtype=jnp.int32) // dh                           # [H]
    q_mask = (row_head[:, None] == col_head[None, :]).astype(jnp.float32) \
        * jnp.float32(1.0 / math.sqrt(dh))                                    # [NH*L, H]
    head_cols = (jnp.arange(N_HEADS, dtype=jnp.int32)[:, None]
                 == col_head[None, :]).astype(jnp.float32)                    # [NH, H]

    tb = _pick_tb(B, max_tb)
    grid = (B // tb,)

    in_specs = [
        pl.BlockSpec((tb, S, F_in), lambda i: (i, 0, 0)),      # x
        pl.BlockSpec((tb, 1, S), lambda i: (i, 0, 0)),         # additive key-mask bias
        pl.BlockSpec((N_HEADS * L, H), lambda i: (0, 0)),      # stacked-Q head mask
        pl.BlockSpec((N_HEADS, H), lambda i: (0, 0)),          # per-head column selectors
        pl.BlockSpec((F_in, 3 * H), lambda i: (0, 0)),         # fused QKV weight (grid-invariant)
        pl.BlockSpec((1, 3 * H), lambda i: (0, 0)),            # fused QKV bias
        pl.BlockSpec((H, H), lambda i: (0, 0)),                # W_o
        pl.BlockSpec((1, H), lambda i: (0, 0)),                # b_o
    ]
    out_spec = pl.BlockSpec((tb, L, H), lambda i: (i, 0, 0))

    # TODO(synk): the two trailing torch.tensor([0]) args of MultiHeadAttention in
    # the original module are unused constants and are not modeled.
    return pl.pallas_call(
        _dense_mat_emb3_kernel,
        out_shape=jax.ShapeDtypeStruct((B, L, H), jnp.float32),
        grid_spec=pltpu.PrefetchScalarGridSpec(
            num_scalar_prefetch=0,
            grid=grid,
            in_specs=in_specs,
            out_specs=out_spec,
        ),
        compiler_params=pltpu.CompilerParams(
            dimension_semantics=("parallel",)),
    )(point_dist_mat.astype(jnp.float32), neg_bias, q_mask, head_cols,
      W_qkv, b_qkv, W_o, b_o)


def _init_params(key, hidden):
    ks = jax.random.split(key, 10)

    def lin(kw, fan_in, fan_out):
        lim = 1.0 / math.sqrt(fan_in)
        return jax.random.uniform(kw, (fan_in, fan_out), jnp.float32, -lim, lim)

    return {
        "W_in": lin(ks[0], 14, hidden), "b_in": jax.random.uniform(ks[1], (1, hidden), jnp.float32, -0.1, 0.1),
        "W_q": lin(ks[2], hidden, hidden), "b_q": jax.random.uniform(ks[3], (1, hidden), jnp.float32, -0.1, 0.1),
        "W_k": lin(ks[4], hidden, hidden), "b_k": jax.random.uniform(ks[5], (1, hidden), jnp.float32, -0.1, 0.1),
        "W_v": lin(ks[6], hidden, hidden), "b_v": jax.random.uniform(ks[7], (1, hidden), jnp.float32, -0.1, 0.1),
        "W_o": lin(ks[8], hidden, hidden), "b_o": jax.random.uniform(ks[9], (1, hidden), jnp.float32, -0.1, 0.1),
    }


def _reference(point_dist_mat, point_masks, params):
    # Pure-JAX reference of the same forward pass (unfused weights).
    B, S, _ = point_dist_mat.shape
    H = params["W_in"].shape[1]
    dh = H // N_HEADS
    ext = jnp.concatenate([jnp.ones((B, 2), jnp.float32), point_masks], axis=1)  # [B, S]
    h = point_dist_mat @ params["W_in"] + params["b_in"]
    q = h @ params["W_q"] + params["b_q"]
    k = h @ params["W_k"] + params["b_k"]
    v = h @ params["W_v"] + params["b_v"]
    q = q.reshape(B, S, N_HEADS, dh).transpose(0, 2, 1, 3)
    k = k.reshape(B, S, N_HEADS, dh).transpose(0, 2, 1, 3)
    v = v.reshape(B, S, N_HEADS, dh).transpose(0, 2, 1, 3)
    s = jnp.einsum("bhqd,bhkd->bhqk", q, k) / math.sqrt(dh)
    s = s + (1.0 - ext)[:, None, None, :] * (-1e9)
    p = jax.nn.softmax(s, axis=-1)
    o = jnp.einsum("bhqk,bhkd->bhqd", p, v).transpose(0, 2, 1, 3).reshape(B, S, H)
    o = o @ params["W_o"] + params["b_o"]
    return o[:, 2:, :]


if __name__ == "__main__":
    B, L, HIDDEN = 2, 8, 32          # seq len fed to attention is L + 2 = 10
    S = L + 2

    key = jax.random.PRNGKey(0)
    k_x, k_m, k_p = jax.random.split(key, 3)

    point_dist_mat = jax.random.normal(k_x, (B, S, 14), jnp.float32)
    point_masks = (jax.random.uniform(k_m, (B, L)) > 0.3).astype(jnp.float32)
    params = _init_params(k_p, HIDDEN)

    out = dense_mat_emb3(point_dist_mat, point_masks, params)
    out = jax.block_until_ready(out)

    ref = _reference(point_dist_mat, point_masks, params)
    assert out.shape == (B, L, HIDDEN)
    # Slightly relaxed tolerance: the fused (W_in @ W_qkv) weights and the EUP
    # approximate reciprocal in the softmax change rounding vs. the unfused ref.
    assert jnp.allclose(out, ref, atol=5e-3, rtol=5e-3), "mismatch vs reference"

    print("KERNEL_OK")
</pallas_src>

<mosaic_0001>
module attributes {stable_mosaic.version = 11 : i64} {
  func.func @_dense_mat_emb3_kernel(%arg0: i32, %arg1: memref<1x10x14xf32, #tpu.memory_space<vmem>>, %arg2: memref<1x1x10xf32, #tpu.memory_space<vmem>>, %arg3: memref<64x32xf32, #tpu.memory_space<vmem>>, %arg4: memref<8x32xf32, #tpu.memory_space<vmem>>, %arg5: memref<14x96xf32, #tpu.memory_space<vmem>>, %arg6: memref<1x96xf32, #tpu.memory_space<vmem>>, %arg7: memref<32x32xf32, #tpu.memory_space<vmem>>, %arg8: memref<1x32xf32, #tpu.memory_space<vmem>>, %arg9: memref<1x8x32xf32, #tpu.memory_space<vmem>>) attributes {dimension_semantics = [#tpu.dimension_semantics<parallel>], iteration_bounds = array<i64: 2>, scalar_prefetch = 0 : i64, scratch_operands = 0 : i64, tpu.core_type = #tpu.core_type<tc>, window_params = [{transform_indices = @transform_0, window_bounds = array<i64: 1, 10, 14>}, {transform_indices = @transform_1, window_bounds = array<i64: 1, 1, 10>}, {pipeline_mode = #tpu.pipeline_mode<synchronous>, transform_indices = @transform_2, window_bounds = array<i64: 64, 32>}, {pipeline_mode = #tpu.pipeline_mode<synchronous>, transform_indices = @transform_3, window_bounds = array<i64: 8, 32>}, {pipeline_mode = #tpu.pipeline_mode<synchronous>, transform_indices = @transform_4, window_bounds = array<i64: 14, 96>}, {pipeline_mode = #tpu.pipeline_mode<synchronous>, transform_indices = @transform_5, window_bounds = array<i64: 1, 96>}, {pipeline_mode = #tpu.pipeline_mode<synchronous>, transform_indices = @transform_6, window_bounds = array<i64: 32, 32>}, {pipeline_mode = #tpu.pipeline_mode<synchronous>, transform_indices = @transform_7, window_bounds = array<i64: 1, 32>}, {transform_indices = @transform_8, window_bounds = array<i64: 1, 8, 32>}]} {
    %c0 = arith.constant 0 : index
    %c0_0 = arith.constant 0 : index
    %0 = vector.load %arg5[%c0, %c0_0] : memref<14x96xf32, #tpu.memory_space<vmem>>, vector<14x96xf32>
    %1 = vector.shape_cast %0 : vector<14x96xf32> to vector<1x14x96xf32>
    %c0_1 = arith.constant 0 : index
    %c0_2 = arith.constant 0 : index
    %c0_3 = arith.constant 0 : index
    %2 = vector.load %arg1[%c0_1, %c0_2, %c0_3] : memref<1x10x14xf32, #tpu.memory_space<vmem>>, vector<1x10x14xf32>
    "tpu.trace_start"() <{level = 10 : i32, message = "bsf,bfh->bsh"}> : () -> ()
    %cst = arith.constant dense<0.000000e+00> : vector<1x10x96xf32>
    %3 = tpu.matmul %2, %1, %cst {dimension_numbers = #tpu.dot_dimension_numbers<[2], [1], [1], [2], [0, 0, 0, 1, 1, 2], [0], [0]>} : vector<1x10x14xf32>, vector<1x14x96xf32>, vector<1x10x96xf32> -> vector<1x10x96xf32>
    "tpu.trace_stop"() : () -> ()
    %c0_4 = arith.constant 0 : index
    %c0_5 = arith.constant 0 : index
    %4 = vector.load %arg6[%c0_4, %c0_5] : memref<1x96xf32, #tpu.memory_space<vmem>>, vector<1x96xf32>
    %5 = vector.shape_cast %4 : vector<1x96xf32> to vector<1x1x96xf32>
    %6 = vector.broadcast %5 : vector<1x1x96xf32> to vector<1x10x96xf32>
    %7 = arith.addf %3, %6 : vector<1x10x96xf32>
    %8 = vector.extract_strided_slice %7 {offsets = [0, 2, 0], sizes = [1, 8, 32], strides = [1, 1, 1]} : vector<1x10x96xf32> to vector<1x8x32xf32>
    %9 = vector.extract_strided_slice %7 {offsets = [0, 0, 32], sizes = [1, 10, 32], strides = [1, 1, 1]} : vector<1x10x96xf32> to vector<1x10x32xf32>
    %10 = vector.extract_strided_slice %7 {offsets = [0, 0, 64], sizes = [1, 10, 32], strides = [1, 1, 1]} : vector<1x10x96xf32> to vector<1x10x32xf32>
    %11 = tpu.concatenate %8, %8, %8, %8, %8, %8, %8, %8 in 1 : vector<1x8x32xf32>, vector<1x8x32xf32>, vector<1x8x32xf32>, vector<1x8x32xf32>, vector<1x8x32xf32>, vector<1x8x32xf32>, vector<1x8x32xf32>, vector<1x8x32xf32> -> vector<1x64x32xf32>
    %c0_6 = arith.constant 0 : index
    %c0_7 = arith.constant 0 : index
    %12 = vector.load %arg3[%c0_6, %c0_7] : memref<64x32xf32, #tpu.memory_space<vmem>>, vector<64x32xf32>
    %13 = vector.shape_cast %12 : vector<64x32xf32> to vector<1x64x32xf32>
    %14 = arith.mulf %11, %13 : vector<1x64x32xf32>
    "tpu.trace_start"() <{level = 10 : i32, message = "bmh,bkh->bmk"}> : () -> ()
    %cst_8 = arith.constant dense<0.000000e+00> : vector<1x64x10xf32>
    %15 = tpu.matmul %14, %9, %cst_8 {dimension_numbers = #tpu.dot_dimension_numbers<[2], [2], [1], [1], [0, 0, 0, 1, 1, 1], [0], [0]>} : vector<1x64x32xf32>, vector<1x10x32xf32>, vector<1x64x10xf32> -> vector<1x64x10xf32>
    "tpu.trace_stop"() : () -> ()
    %c0_9 = arith.constant 0 : index
    %c0_10 = arith.constant 0 : index
    %c0_11 = arith.constant 0 : index
    %16 = vector.load %arg2[%c0_9, %c0_10, %c0_11] : memref<1x1x10xf32, #tpu.memory_space<vmem>>, vector<1x1x10xf32>
    %17 = vector.broadcast %16 : vector<1x1x10xf32> to vector<1x64x10xf32>
    %18 = arith.addf %15, %17 : vector<1x64x10xf32>
    %cst_12 = arith.constant dense<0xFF800000> : vector<1x64xf32>
    %19 = vector.multi_reduction <maximumf>, %18, %cst_12 [2] : vector<1x64x10xf32> to vector<1x64xf32>
    %20 = vector.shape_cast %19 : vector<1x64xf32> to vector<1x64x1xf32>
    %21 = vector.broadcast %20 : vector<1x64x1xf32> to vector<1x64x10xf32>
    %22 = arith.subf %18, %21 : vector<1x64x10xf32>
    %23 = math.exp %22 : vector<1x64x10xf32>
    %cst_13 = arith.constant dense<0.000000e+00> : vector<1x64xf32>
    %24 = vector.multi_reduction <add>, %23, %cst_13 [2] : vector<1x64x10xf32> to vector<1x64xf32>
    %25 = vector.shape_cast %24 : vector<1x64xf32> to vector<1x64x1xf32>
    %26 = tpu.reciprocal %25 {approx = true} : vector<1x64x1xf32> -> vector<1x64x1xf32>
    %27 = vector.broadcast %26 : vector<1x64x1xf32> to vector<1x64x10xf32>
    %28 = arith.mulf %23, %27 : vector<1x64x10xf32>
    "tpu.trace_start"() <{level = 10 : i32, message = "bmk,bkc->bmc"}> : () -> ()
    %cst_14 = arith.constant dense<0.000000e+00> : vector<1x64x32xf32>
    %29 = tpu.matmul %28, %10, %cst_14 {dimension_numbers = #tpu.dot_dimension_numbers<[2], [1], [1], [2], [0, 0, 0, 1, 1, 2], [0], [0]>} : vector<1x64x10xf32>, vector<1x10x32xf32>, vector<1x64x32xf32> -> vector<1x64x32xf32>
    "tpu.trace_stop"() : () -> ()
    %30 = vector.extract_strided_slice %29 {offsets = [0, 0, 0], sizes = [1, 8, 32], strides = [1, 1, 1]} : vector<1x64x32xf32> to vector<1x8x32xf32>
    %c0_15 = arith.constant 0 : index
    %c0_16 = arith.constant 0 : index
    %31 = vector.load %arg4[%c0_15, %c0_16] : memref<8x32xf32, #tpu.memory_space<vmem>>, vector<1x32xf32>
    %32 = vector.shape_cast %31 : vector<1x32xf32> to vector<1x1x32xf32>
    %33 = vector.broadcast %32 : vector<1x1x32xf32> to vector<1x8x32xf32>
    %34 = arith.mulf %30, %33 : vector<1x8x32xf32>
    %35 = vector.extract_strided_slice %29 {offsets = [0, 8, 0], sizes = [1, 8, 32], strides = [1, 1, 1]} : vector<1x64x32xf32> to vector<1x8x32xf32>
    %c1 = arith.constant 1 : index
    %c0_17 = arith.constant 0 : index
    %36 = vector.load %arg4[%c1, %c0_17] : memref<8x32xf32, #tpu.memory_space<vmem>>, vector<1x32xf32>
    %37 = vector.shape_cast %36 : vector<1x32xf32> to vector<1x1x32xf32>
    %38 = vector.broadcast %37 : vector<1x1x32xf32> to vector<1x8x32xf32>
    %39 = arith.mulf %35, %38 : vector<1x8x32xf32>
    %40 = arith.addf %34, %39 : vector<1x8x32xf32>
    %41 = vector.extract_strided_slice %29 {offsets = [0, 16, 0], sizes = [1, 8, 32], strides = [1, 1, 1]} : vector<1x64x32xf32> to vector<1x8x32xf32>
    %c2 = arith.constant 2 : index
    %c0_18 = arith.constant 0 : index
    %42 = vector.load %arg4[%c2, %c0_18] : memref<8x32xf32, #tpu.memory_space<vmem>>, vector<1x32xf32>
    %43 = vector.shape_cast %42 : vector<1x32xf32> to vector<1x1x32xf32>
    %44 = vector.broadcast %43 : vector<1x1x32xf32> to vector<1x8x32xf32>
    %45 = arith.mulf %41, %44 : vector<1x8x32xf32>
    %46 = arith.addf %40, %45 : vector<1x8x32xf32>
    %47 = vector.extract_strided_slice %29 {offsets = [0, 24, 0], sizes = [1, 8, 32], strides = [1, 1, 1]} : vector<1x64x32xf32> to vector<1x8x32xf32>
    %c3 = arith.constant 3 : index
    %c0_19 = arith.constant 0 : index
    %48 = vector.load %arg4[%c3, %c0_19] : memref<8x32xf32, #tpu.memory_space<vmem>>, vector<1x32xf32>
    %49 = vector.shape_cast %48 : vector<1x32xf32> to vector<1x1x32xf32>
    %50 = vector.broadcast %49 : vector<1x1x32xf32> to vector<1x8x32xf32>
    %51 = arith.mulf %47, %50 : vector<1x8x32xf32>
    %52 = arith.addf %46, %51 : vector<1x8x32xf32>
    %53 = vector.extract_strided_slice %29 {offsets = [0, 32, 0], sizes = [1, 8, 32], strides = [1, 1, 1]} : vector<1x64x32xf32> to vector<1x8x32xf32>
    %c4 = arith.constant 4 : index
    %c0_20 = arith.constant 0 : index
    %54 = vector.load %arg4[%c4, %c0_20] : memref<8x32xf32, #tpu.memory_space<vmem>>, vector<1x32xf32>
    %55 = vector.shape_cast %54 : vector<1x32xf32> to vector<1x1x32xf32>
    %56 = vector.broadcast %55 : vector<1x1x32xf32> to vector<1x8x32xf32>
    %57 = arith.mulf %53, %56 : vector<1x8x32xf32>
    %58 = arith.addf %52, %57 : vector<1x8x32xf32>
    %59 = vector.extract_strided_slice %29 {offsets = [0, 40, 0], sizes = [1, 8, 32], strides = [1, 1, 1]} : vector<1x64x32xf32> to vector<1x8x32xf32>
    %c5 = arith.constant 5 : index
    %c0_21 = arith.constant 0 : index
    %60 = vector.load %arg4[%c5, %c0_21] : memref<8x32xf32, #tpu.memory_space<vmem>>, vector<1x32xf32>
    %61 = vector.shape_cast %60 : vector<1x32xf32> to vector<1x1x32xf32>
    %62 = vector.broadcast %61 : vector<1x1x32xf32> to vector<1x8x32xf32>
    %63 = arith.mulf %59, %62 : vector<1x8x32xf32>
    %64 = arith.addf %58, %63 : vector<1x8x32xf32>
    %65 = vector.extract_strided_slice %29 {offsets = [0, 48, 0], sizes = [1, 8, 32], strides = [1, 1, 1]} : vector<1x64x32xf32> to vector<1x8x32xf32>
    %c6 = arith.constant 6 : index
    %c0_22 = arith.constant 0 : index
    %66 = vector.load %arg4[%c6, %c0_22] : memref<8x32xf32, #tpu.memory_space<vmem>>, vector<1x32xf32>
    %67 = vector.shape_cast %66 : vector<1x32xf32> to vector<1x1x32xf32>
    %68 = vector.broadcast %67 : vector<1x1x32xf32> to vector<1x8x32xf32>
    %69 = arith.mulf %65, %68 : vector<1x8x32xf32>
    %70 = arith.addf %64, %69 : vector<1x8x32xf32>
    %71 = vector.extract_strided_slice %29 {offsets = [0, 56, 0], sizes = [1, 8, 32], strides = [1, 1, 1]} : vector<1x64x32xf32> to vector<1x8x32xf32>
    %c7 = arith.constant 7 : index
    %c0_23 = arith.constant 0 : index
    %72 = vector.load %arg4[%c7, %c0_23] : memref<8x32xf32, #tpu.memory_space<vmem>>, vector<1x32xf32>
    %73 = vector.shape_cast %72 : vector<1x32xf32> to vector<1x1x32xf32>
    %74 = vector.broadcast %73 : vector<1x1x32xf32> to vector<1x8x32xf32>
    %75 = arith.mulf %71, %74 : vector<1x8x32xf32>
    %76 = arith.addf %70, %75 : vector<1x8x32xf32>
    %c0_24 = arith.constant 0 : index
    %c0_25 = arith.constant 0 : index
    %77 = vector.load %arg7[%c0_24, %c0_25] : memref<32x32xf32, #tpu.memory_space<vmem>>, vector<32x32xf32>
    %78 = vector.shape_cast %77 : vector<32x32xf32> to vector<1x32x32xf32>
    "tpu.trace_start"() <{level = 10 : i32, message = "blh,bho->blo"}> : () -> ()
    %cst_26 = arith.constant dense<0.000000e+00> : vector<1x8x32xf32>
    %79 = tpu.matmul %76, %78, %cst_26 {dimension_numbers = #tpu.dot_dimension_numbers<[2], [1], [1], [2], [0, 0, 0, 1, 1, 2], [0], [0]>} : vector<1x8x32xf32>, vector<1x32x32xf32>, vector<1x8x32xf32> -> vector<1x8x32xf32>
    "tpu.trace_stop"() : () -> ()
    %c0_27 = arith.constant 0 : index
    %c0_28 = arith.constant 0 : index
    %80 = vector.load %arg8[%c0_27, %c0_28] : memref<1x32xf32, #tpu.memory_space<vmem>>, vector<1x32xf32>
    %81 = vector.shape_cast %80 : vector<1x32xf32> to vector<1x1x32xf32>
    %82 = vector.broadcast %81 : vector<1x1x32xf32> to vector<1x8x32xf32>
    %83 = arith.addf %79, %82 : vector<1x8x32xf32>
    %c0_29 = arith.constant 0 : index
    %c0_30 = arith.constant 0 : index
    %c0_31 = arith.constant 0 : index
    %84 = vector.load %arg9[%c0_29, %c0_30, %c0_31] : memref<1x8x32xf32, #tpu.memory_space<vmem>>, vector<1x8x32xf32>
    tpu.vector_store %arg9[%c0_29, %c0_30, %c0_31], %83 {strides = array<i32>} : memref<1x8x32xf32, #tpu.memory_space<vmem>>, vector<1x8x32xf32>,
    return
  }
  func.func @transform_0(%arg0: i32) -> (i32, i32, i32) {
    %c0_i32 = arith.constant 0 : i32
    %c0_i32_0 = arith.constant 0 : i32
    %c0_i32_1 = arith.constant 0 : i32
    return %arg0, %c0_i32, %c0_i32_0 : i32, i32, i32
  }
  func.func @transform_1(%arg0: i32) -> (i32, i32, i32) {
    %c0_i32 = arith.constant 0 : i32
    %c0_i32_0 = arith.constant 0 : i32
    %c0_i32_1 = arith.constant 0 : i32
    return %arg0, %c0_i32, %c0_i32_0 : i32, i32, i32
  }
  func.func @transform_2(%arg0: i32) -> (i32, i32) {
    %c0_i32 = arith.constant 0 : i32
    %c0_i32_0 = arith.constant 0 : i32
    %c0_i32_1 = arith.constant 0 : i32
    return %c0_i32, %c0_i32_0 : i32, i32
  }
  func.func @transform_3(%arg0: i32) -> (i32, i32) {
    %c0_i32 = arith.constant 0 : i32
    %c0_i32_0 = arith.constant 0 : i32
    %c0_i32_1 = arith.constant 0 : i32
    return %c0_i32, %c0_i32_0 : i32, i32
  }
  func.func @transform_4(%arg0: i32) -> (i32, i32) {
    %c0_i32 = arith.constant 0 : i32
    %c0_i32_0 = arith.constant 0 : i32
    %c0_i32_1 = arith.constant 0 : i32
    return %c0_i32, %c0_i32_0 : i32, i32
  }
  func.func @transform_5(%arg0: i32) -> (i32, i32) {
    %c0_i32 = arith.constant 0 : i32
    %c0_i32_0 = arith.constant 0 : i32
    %c0_i32_1 = arith.constant 0 : i32
    return %c0_i32, %c0_i32_0 : i32, i32
  }
  func.func @transform_6(%arg0: i32) -> (i32, i32) {
    %c0_i32 = arith.constant 0 : i32
    %c0_i32_0 = arith.constant 0 : i32
    %c0_i32_1 = arith.constant 0 : i32
    return %c0_i32, %c0_i32_0 : i32, i32
  }
  func.func @transform_7(%arg0: i32) -> (i32, i32) {
    %c0_i32 = arith.constant 0 : i32
    %c0_i32_0 = arith.constant 0 : i32
    %c0_i32_1 = arith.constant 0 : i32
    return %c0_i32, %c0_i32_0 : i32, i32
  }
  func.func @transform_8(%arg0: i32) -> (i32, i32, i32) {
    %c0_i32 = arith.constant 0 : i32
    %c0_i32_0 = arith.constant 0 : i32
    %c0_i32_1 = arith.constant 0 : i32
    return %arg0, %c0_i32, %c0_i32_0 : i32, i32, i32
  }
}

</mosaic_0001>

<llo_original>
// kernel: tpu_custom_call.1
$region0: #{tpu_custom_call.1}
  #allocation0 [shape = 'u32[]', space=smem, size = 0x4, offset = 0x4, fixed_abs, tag = 'smem constant byte address 0x4 - core index']
  #allocation1 [shape = 'u32[72,128]{1,0:T(1,128)}', space=vmem, size = 0x9000, scoped, tag = 'internal scratch']
  %s0 = inlined_call_operand.vmem [shape: f32[2,10,14], index: 0, kind: input, shape index: {}]
  %s1 = inlined_call_operand.vmem [shape: f32[2,1,10], index: 1, kind: input, shape index: {}]
  %s2 = inlined_call_operand.vmem [shape: f32[64,32], index: 2, kind: input, shape index: {}]
  %s3 = inlined_call_operand.vmem [shape: f32[8,32], index: 3, kind: input, shape index: {}]
  %s4 = inlined_call_operand.vmem [shape: f32[14,96], index: 4, kind: input, shape index: {}]
  %s5 = inlined_call_operand.vmem [shape: f32[1,96], index: 5, kind: input, shape index: {}]
  %s6 = inlined_call_operand.vmem [shape: f32[32,32], index: 6, kind: input, shape index: {}]
  %s7 = inlined_call_operand.vmem [shape: f32[1,32], index: 7, kind: input, shape index: {}]
  %s8 = inlined_call_operand.hbm [shape: f32[2,8,32], index: 8, kind: output, shape index: {}]
  %s9 = sld [smem:[#allocation0]]
  $region65: #{tpu_custom_call.1} parent=0
    _
  %s11 = ssub.s32 1, %s9
  %s12 = scalar_select 0, %s11, %s9
  $region1: #{tpu_custom_call.1} parent=0
    #allocation2 [shape = 'u8[8192]{0}', space=vmem, size = 0x2000, scoped, tag = 'output window, operand 0']
    #allocation3 [shape = 's32[2]{0}', space=sflag, size = 0x8, scoped, tag = 'scoped memory for tpu_custom_call.1']
    %13 = vsyncpa [#allocation3], 0
    %s14 = scalar_lea.sflag [#allocation3], 1
    %15 = vsyncpa %s14, 0
    loop: start=0, step=1, limit=4
    $region2: #{tpu_custom_call.1} parent=1 // loop_pre_header
      _
    $region3: #{tpu_custom_call.1} parent=1 // loop_header
      %s17 = sphi 0, %s21
      %p18 = scmp.ge.s32.totalorder %s17, 4
      %s27 = sphi 0, %s29
      %s30 = sphi 0, %s27
      %s31 = sphi 0, %s30
      %s47 = sphi 0, %s31
      %s53 = sphi 0, %s55
      %s56 = sphi 0, %s53
      %s57 = sphi 0, %s56
      %s73 = sphi 0, %s57
      %s77 = sphi 0, %s77
      %s79 = sphi 0, %s77
      %s80 = sphi 0, %s79
      %s94 = sphi 0, %s80
      %s98 = sphi 0, %s98
      %s100 = sphi 0, %s98
      %s101 = sphi 0, %s100
      %s115 = sphi 0, %s101
      %s119 = sphi 0, %s119
      %s121 = sphi 0, %s119
      %s122 = sphi 0, %s121
      %s136 = sphi 0, %s122
      %s140 = sphi 0, %s140
      %s142 = sphi 0, %s140
      %s143 = sphi 0, %s142
      %s157 = sphi 0, %s143
      %s161 = sphi 0, %s161
      %s163 = sphi 0, %s161
      %s164 = sphi 0, %s163
      %s178 = sphi 0, %s164
      %s182 = sphi 0, %s182
      %s184 = sphi 0, %s182
      %s185 = sphi 0, %s184
      %s199 = sphi 0, %s185
      %s205 = sphi 0, %s207
      %s208 = sphi 0, %s205
      %s209 = sphi 0, %s208
      %s225 = sphi 0, %s209
    $region4: #{tpu_custom_call.1} parent=1 // loop_header_branch
      %20 = sbr.rel (%p18) target = $region8
    $region5: #{tpu_custom_call.1} parent=1 // loop_body
      %s22 = ssub.s32 %s17, 1
      %s23 = ssub.s32 %s17, 2
      %s24 = sadd.s32 %s17, 1
      %s25 = ssub.s32 %s17, %s24
      %p26 = scmp.eq.s32.totalorder %s25, 0
      %s28 = sadd.s32 %s27, 1
      %s29 = scalar_select %p26, %s27, %s28
      %p32 = pneg %p26
      %p33 = scmp.eq.s32.totalorder %s17, 1
      %p34 = por %p32, %p33
      %p35 = scmp.ne.s32.totalorder %s27, %s30
      %p36 = scmp.eq.s32.totalorder %s17, 0
      %p37 = por %p35, %p36
      %p38 = scmp.ne.s32.totalorder %s27, %s30
      %p39 = scmp.eq.s32.totalorder %s22, 1
      %p40 = por %p38, %p39
      %p41 = scmp.ne.s32.totalorder %s30, %s31
      %p42 = scmp.eq.s32.totalorder %s22, 0
      %p43 = por %p41, %p42
      %p44 = scmp.ne.s32.totalorder %s30, %s31
      %p45 = scmp.eq.s32.totalorder %s23, 1
      %p46 = por %p44, %p45
      %p48 = scmp.ne.s32.totalorder %s31, %s47
      %p49 = scmp.eq.s32.totalorder %s23, 0
      %p50 = por %p48, %p49
      %s51 = ssub.s32 %s17, %s24
      %p52 = scmp.eq.s32.totalorder %s51, 0
      %s54 = sadd.s32 %s53, 1
      %s55 = scalar_select %p52, %s53, %s54
      %p58 = pneg %p52
      %p59 = scmp.eq.s32.totalorder %s17, 1
      %p60 = por %p58, %p59
      %p61 = scmp.ne.s32.totalorder %s53, %s56
      %p62 = scmp.eq.s32.totalorder %s17, 0
      %p63 = por %p61, %p62
      %p64 = scmp.ne.s32.totalorder %s53, %s56
      %p65 = scmp.eq.s32.totalorder %s22, 1
      %p66 = por %p64, %p65
      %p67 = scmp.ne.s32.totalorder %s56, %s57
      %p68 = scmp.eq.s32.totalorder %s22, 0
      %p69 = por %p67, %p68
      %p70 = scmp.ne.s32.totalorder %s56, %s57
      %p71 = scmp.eq.s32.totalorder %s23, 1
      %p72 = por %p70, %p71
      %p74 = scmp.ne.s32.totalorder %s57, %s73
      %p75 = scmp.eq.s32.totalorder %s23, 0
      %p76 = por %p74, %p75
      %s78 = sadd.s32 %s77, 1
      %p81 = scmp.eq.s32.totalorder %s17, 1
      %p82 = scmp.ne.s32.totalorder %s77, %s79
      %p83 = scmp.eq.s32.totalorder %s17, 0
      %p84 = por %p82, %p83
      %p85 = scmp.ne.s32.totalorder %s77, %s79
      %p86 = scmp.eq.s32.totalorder %s22, 1
      %p87 = por %p85, %p86
      %p88 = scmp.ne.s32.totalorder %s79, %s80
      %p89 = scmp.eq.s32.totalorder %s22, 0
      %p90 = por %p88, %p89
      %p91 = scmp.ne.s32.totalorder %s79, %s80
      %p92 = scmp.eq.s32.totalorder %s23, 1
      %p93 = por %p91, %p92
      %p95 = scmp.ne.s32.totalorder %s80, %s94
      %p96 = scmp.eq.s32.totalorder %s23, 0
      %p97 = por %p95, %p96
      %s99 = sadd.s32 %s98, 1
      %p102 = scmp.eq.s32.totalorder %s17, 1
      %p103 = scmp.ne.s32.totalorder %s98, %s100
      %p104 = scmp.eq.s32.totalorder %s17, 0
      %p105 = por %p103, %p104
      %p106 = scmp.ne.s32.totalorder %s98, %s100
      %p107 = scmp.eq.s32.totalorder %s22, 1
      %p108 = por %p106, %p107
      %p109 = scmp.ne.s32.totalorder %s100, %s101
      %p110 = scmp.eq.s32.totalorder %s22, 0
      %p111 = por %p109, %p110
      %p112 = scmp.ne.s32.totalorder %s100, %s101
      %p113 = scmp.eq.s32.totalorder %s23, 1
      %p114 = por %p112, %p113
      %p116 = scmp.ne.s32.totalorder %s101, %s115
      %p117 = scmp.eq.s32.totalorder %s23, 0
      %p118 = por %p116, %p117
      %s120 = sadd.s32 %s119, 1
      %p123 = scmp.eq.s32.totalorder %s17, 1
      %p124 = scmp.ne.s32.totalorder %s119, %s121
      %p125 = scmp.eq.s32.totalorder %s17, 0
      %p126 = por %p124, %p125
      %p127 = scmp.ne.s32.totalorder %s119, %s121
      %p128 = scmp.eq.s32.totalorder %s22, 1
      %p129 = por %p127, %p128
      %p130 = scmp.ne.s32.totalorder %s121, %s122
      %p131 = scmp.eq.s32.totalorder %s22, 0
      %p132 = por %p130, %p131
      %p133 = scmp.ne.s32.totalorder %s121, %s122
      %p134 = scmp.eq.s32.totalorder %s23, 1
      %p135 = por %p133, %p134
      %p137 = scmp.ne.s32.totalorder %s122, %s136
      %p138 = scmp.eq.s32.totalorder %s23, 0
      %p139 = por %p137, %p138
      %s141 = sadd.s32 %s140, 1
      %p144 = scmp.eq.s32.totalorder %s17, 1
      %p145 = scmp.ne.s32.totalorder %s140, %s142
      %p146 = scmp.eq.s32.totalorder %s17, 0
      %p147 = por %p145, %p146
      %p148 = scmp.ne.s32.totalorder %s140, %s142
      %p149 = scmp.eq.s32.totalorder %s22, 1
      %p150 = por %p148, %p149
      %p151 = scmp.ne.s32.totalorder %s142, %s143
      %p152 = scmp.eq.s32.totalorder %s22, 0
      %p153 = por %p151, %p152
      %p154 = scmp.ne.s32.totalorder %s142, %s143
      %p155 = scmp.eq.s32.totalorder %s23, 1
      %p156 = por %p154, %p155
      %p158 = scmp.ne.s32.totalorder %s143, %s157
      %p159 = scmp.eq.s32.totalorder %s23, 0
      %p160 = por %p158, %p159
      %s162 = sadd.s32 %s161, 1
      %p165 = scmp.eq.s32.totalorder %s17, 1
      %p166 = scmp.ne.s32.totalorder %s161, %s163
      %p167 = scmp.eq.s32.totalorder %s17, 0
      %p168 = por %p166, %p167
      %p169 = scmp.ne.s32.totalorder %s161, %s163
      %p170 = scmp.eq.s32.totalorder %s22, 1
      %p171 = por %p169, %p170
      %p172 = scmp.ne.s32.totalorder %s163, %s164
      %p173 = scmp.eq.s32.totalorder %s22, 0
      %p174 = por %p172, %p173
      %p175 = scmp.ne.s32.totalorder %s163, %s164
      %p176 = scmp.eq.s32.totalorder %s23, 1
      %p177 = por %p175, %p176
      %p179 = scmp.ne.s32.totalorder %s164, %s178
      %p180 = scmp.eq.s32.totalorder %s23, 0
      %p181 = por %p179, %p180
      %s183 = sadd.s32 %s182, 1
      %p186 = scmp.eq.s32.totalorder %s17, 1
      %p187 = scmp.ne.s32.totalorder %s182, %s184
      %p188 = scmp.eq.s32.totalorder %s17, 0
      %p189 = por %p187, %p188
      %p190 = scmp.ne.s32.totalorder %s182, %s184
      %p191 = scmp.eq.s32.totalorder %s22, 1
      %p192 = por %p190, %p191
      %p193 = scmp.ne.s32.totalorder %s184, %s185
      %p194 = scmp.eq.s32.totalorder %s22, 0
      %p195 = por %p193, %p194
      %p196 = scmp.ne.s32.totalorder %s184, %s185
      %p197 = scmp.eq.s32.totalorder %s23, 1
      %p198 = por %p196, %p197
      %p200 = scmp.ne.s32.totalorder %s185, %s199
      %p201 = scmp.eq.s32.totalorder %s23, 0
      %p202 = por %p200, %p201
      %s203 = ssub.s32 %s17, %s24
      %p204 = scmp.eq.s32.totalorder %s203, 0
      %s206 = sadd.s32 %s205, 1
      %s207 = scalar_select %p204, %s205, %s206
      %p210 = pneg %p204
      %p211 = scmp.eq.s32.totalorder %s17, 1
      %p212 = por %p210, %p211
      %p213 = scmp.ne.s32.totalorder %s205, %s208
      %p214 = scmp.eq.s32.totalorder %s17, 0
      %p215 = por %p213, %p214
      %p216 = scmp.ne.s32.totalorder %s205, %s208
      %p217 = scmp.eq.s32.totalorder %s22, 1
      %p218 = por %p216, %p217
      %p219 = scmp.ne.s32.totalorder %s208, %s209
      %p220 = scmp.eq.s32.totalorder %s22, 0
      %p221 = por %p219, %p220
      %p222 = scmp.ne.s32.totalorder %s208, %s209
      %p223 = scmp.eq.s32.totalorder %s23, 1
      %p224 = por %p222, %p223
      %p226 = scmp.ne.s32.totalorder %s209, %s225
      %p227 = scmp.eq.s32.totalorder %s23, 0
      %p228 = por %p226, %p227
      %p229 = scmp.le.s32.totalorder 1, %s17
      %p230 = scmp.lt.s32.totalorder %s17, 3
      %p231 = pnand %p229, %p230
      %p232 = pneg %p231
      // Predicated region
      $region9: #{tpu_custom_call.1} parent=5 // pred_check
        _
      $region10: #{tpu_custom_call.1} parent=5 // pred_check_branch
        %234 = sbr.rel (%p231) target = $region12
      $region11: #{tpu_custom_call.1} parent=5 // pred_region
        %s235 = ssub.s32 %s17, 1
        // Predicated region
        $region13: #{tpu_custom_call.1} parent=11 // pred_check
          %p236 = pneg %p90
        $region14: #{tpu_custom_call.1} parent=11 // pred_check_branch
          %238 = sbr.rel (%p236) target = $region16
        $region15: #{tpu_custom_call.1} parent=11 // pred_region
          _
        $region16: #{tpu_custom_call.1} parent=11 // pred_fallthru
          _
        // Predicated region
        $region17: #{tpu_custom_call.1} parent=11 // pred_check
          %p239 = pneg %p111
        $region18: #{tpu_custom_call.1} parent=11 // pred_check_branch
          %241 = sbr.rel (%p239) target = $region20
        $region19: #{tpu_custom_call.1} parent=11 // pred_region
          _
        $region20: #{tpu_custom_call.1} parent=11 // pred_fallthru
          _
        // Predicated region
        $region21: #{tpu_custom_call.1} parent=11 // pred_check
          %p242 = pneg %p132
        $region22: #{tpu_custom_call.1} parent=11 // pred_check_branch
          %244 = sbr.rel (%p242) target = $region24
        $region23: #{tpu_custom_call.1} parent=11 // pred_region
          _
        $region24: #{tpu_custom_call.1} parent=11 // pred_fallthru
          _
        // Predicated region
        $region25: #{tpu_custom_call.1} parent=11 // pred_check
          %p245 = pneg %p153
        $region26: #{tpu_custom_call.1} parent=11 // pred_check_branch
          %247 = sbr.rel (%p245) target = $region28
        $region27: #{tpu_custom_call.1} parent=11 // pred_region
          _
        $region28: #{tpu_custom_call.1} parent=11 // pred_fallthru
          _
        // Predicated region
        $region29: #{tpu_custom_call.1} parent=11 // pred_check
          %p248 = pneg %p174
        $region30: #{tpu_custom_call.1} parent=11 // pred_check_branch
          %250 = sbr.rel (%p248) target = $region32
        $region31: #{tpu_custom_call.1} parent=11 // pred_region
          _
        $region32: #{tpu_custom_call.1} parent=11 // pred_fallthru
          _
        // Predicated region
        $region33: #{tpu_custom_call.1} parent=11 // pred_check
          %p251 = pneg %p195
        $region34: #{tpu_custom_call.1} parent=11 // pred_check_branch
          %253 = sbr.rel (%p251) target = $region36
        $region35: #{tpu_custom_call.1} parent=11 // pred_region
          _
        $region36: #{tpu_custom_call.1} parent=11 // pred_fallthru
          _
      $region12: #{tpu_custom_call.1} parent=5 // pred_fallthru
        _
      %p254 = scmp.lt.s32.totalorder %s17, 2
      // Predicated region
      $region37: #{tpu_custom_call.1} parent=5 // pred_check
        %p255 = pneg %p254
      $region38: #{tpu_custom_call.1} parent=5 // pred_check_branch
        %257 = sbr.rel (%p255) target = $region40
      $region39: #{tpu_custom_call.1} parent=5 // pred_region
        // Predicated region
        $region41: #{tpu_custom_call.1} parent=39 // pred_check
          %p258 = pneg %p37
        $region42: #{tpu_custom_call.1} parent=39 // pred_check_branch
          %260 = sbr.rel (%p258) target = $region44
        $region43: #{tpu_custom_call.1} parent=39 // pred_region
          %p261 = scmp.lt.s32.totalorder %s17, 1
          %s262 = scalar_select %p261, %s17, 1
          %s263 = smul.addr %s262, 2
          %s264 = smul.addr %s263, 8
          %s265 = scalar_lea.vmem %s0, %s264
        $region44: #{tpu_custom_call.1} parent=39 // pred_fallthru
          _
        // Predicated region
        $region45: #{tpu_custom_call.1} parent=39 // pred_check
          %p266 = pneg %p63
        $region46: #{tpu_custom_call.1} parent=39 // pred_check_branch
          %268 = sbr.rel (%p266) target = $region48
        $region47: #{tpu_custom_call.1} parent=39 // pred_region
          %p269 = scmp.lt.s32.totalorder %s17, 1
          %s270 = scalar_select %p269, %s17, 1
          %s271 = scalar_lea.vmem %s1, %s270
        $region48: #{tpu_custom_call.1} parent=39 // pred_fallthru
          _
      $region40: #{tpu_custom_call.1} parent=5 // pred_fallthru
        _
      %p272 = scmp.le.s32.totalorder 1, %s17
      %p273 = scmp.lt.s32.totalorder %s17, 3
      %p274 = pnand %p272, %p273
      %p275 = pneg %p274
      // Predicated region
      $region49: #{tpu_custom_call.1} parent=5 // pred_check
        _
      $region50: #{tpu_custom_call.1} parent=5 // pred_check_branch
        %277 = sbr.rel (%p274) target = $region52
      $region51: #{tpu_custom_call.1} parent=5 // pred_region
        %s278 = ssub.s32 %s17, 1
        %p279 = scmp.lt.s32.totalorder %s22, 1
        %s280 = scalar_select %p279, %s22, 1
        %s281 = smul.addr %s280, 2
        %s282 = smul.addr %s281, 8
        %s283 = scalar_lea.vmem %s0, %s282
        %p284 = pneg %p43
        %p285 = pneg %p40
        %p286 = scmp.lt.s32.totalorder %s22, 1
        %s287 = scalar_select %p286, %s22, 1
        %s288 = scalar_lea.vmem %s1, %s287
        %p289 = pneg %p69
        %p290 = pneg %p66
        %p291 = pneg %p90
        %p292 = pneg %p87
        %p293 = pneg %p111
        %p294 = pneg %p108
        %p295 = pneg %p132
        %p296 = pneg %p129
        %p297 = pneg %p153
        %p298 = pneg %p150
        %p299 = pneg %p174
        %p300 = pneg %p171
        %p301 = pneg %p195
        %p302 = pneg %p192
        %p303 = pneg %p221
        %p304 = pneg %p218
        %s305 = sand.u32 %s208, 1
        %s306 = scalar_lea.sflag [#allocation3], %s305
        %s307 = sand.u32 %s208, 1
        %s308 = smul.addr %s307, 8
        %s309 = scalar_lea.vmem [#allocation2], %s308
        %p310 = scmp.lt.s32.totalorder %s22, 1
        %s311 = scalar_select %p310, %s22, 1
        %s312 = smul.addr %s311, 2
        %s313 = smul.addr %s312, 8
        %s314 = scalar_lea.vmem %s0, %s313
        %p315 = scmp.lt.s32.totalorder %s22, 1
        %s316 = scalar_select %p315, %s22, 1
        %s317 = scalar_lea.vmem %s1, %s316
        %v318 = vld [vmem:[%s4] sm:$0xff]
        %v319 = vld [vmem:[%s4 + $0x8] sm:$0x3f]
        %v320 = vld [vmem:[%s314] sm:$0xff]
        %v321 = vld [vmem:[%s314 + $0x8] sm:$0x3]
        %v322 = vld [vmem:[%s5] sm:$0x1]
        %v324 = vperm.slane %v322, 0
        %vm326 = vcmask 113664
        %v328 = vsel %vm326, %v320, 0
        %v331 = vsel %vm326, %v321, 0
        %vm333 = vcmask 1045504
        %v335 = vsel %vm333, %v319, 0
        %337 = vmatpush.msra.mxu0 0.0
        %338 = vmatpush.msra.mxu0 0.0
        %339 = vmatpush.msra.mxu0 0.0
        %340 = vmatpush.msra.mxu0 0.0
        %341 = vmatpush.msra.mxu0 0.0
        %342 = vmatpush.msra.mxu0 0.0
        %343 = vmatpush.msra.mxu0 0.0
        %344 = vmatpush.msra.mxu0 0.0
        %345 = vmatpush.msra.mxu0 0.0
        %346 = vmatpush.msra.mxu0 0.0
        %347 = vmatpush.msra.mxu0 0.0
        %348 = vmatpush.msra.mxu0 0.0
        %349 = vmatpush.msra.mxu0 0.0
        %350 = vmatpush.msra.mxu0 0.0
        %351 = vmatpush.msra.mxu0 %v335
        %352 = vmatpush.msra.mxu0 %v318
        %353 = vmatmul.f32.gmra.mxu0 %v328
        %v354 = vpop.f32.mrf.mxu0
        %v355 = vadd.f32 %v324, %v354
        %356 = vmatmul.f32.gmra.mxu0 %v331
        %v357 = vpop.f32.mrf.mxu0
        %v358 = vadd.f32 %v324, %v357
        %359 = vdwg.mxu0
        %v362 = vrot.slane %v355, 2
        %v363 = vrot.slane %v358, 2
        %v364 = vsel %vm333, %v362, %v363
        %v366 = vld [vmem:[%s2] sm:$0xff]
        %v367 = vld [vmem:[%s2 + $0x8] sm:$0xff]
        %v368 = vld [vmem:[%s2 + $0x10] sm:$0xff]
        %v369 = vld [vmem:[%s2 + $0x18] sm:$0xff]
        %v370 = vld [vmem:[%s2 + $0x20] sm:$0xff]
        %v371 = vld [vmem:[%s2 + $0x28] sm:$0xff]
        %v372 = vld [vmem:[%s2 + $0x30] sm:$0xff]
        %v373 = vld [vmem:[%s2 + $0x38] sm:$0xff]
        %v374 = vmul.f32 %v364, %v366
        %v375 = vmul.f32 %v364, %v367
        %v376 = vmul.f32 %v364, %v368
        %v377 = vmul.f32 %v364, %v369
        %v378 = vmul.f32 %v364, %v370
        %v379 = vmul.f32 %v364, %v371
        %v380 = vmul.f32 %v364, %v372
        %v381 = vmul.f32 %v364, %v373
        %v382 = vld [vmem:[%s317] sm:$0x1]
        %v384 = vperm.slane %v382, 0
        %386 = vrot.lane.b32.xlu0 %v355, 96
        %v387 = vpop.permute.xlu0 %386
        %388 = vrot.lane.b32.xlu0 %v358, 96
        %v389 = vpop.permute.xlu0 %388
        %vm390 = vcmask 261120
        %v392 = vsel %vm390, %v374, 0
        %v395 = vsel %vm390, %v375, 0
        %v398 = vsel %vm390, %v376, 0
        %v401 = vsel %vm390, %v377, 0
        %v404 = vsel %vm390, %v378, 0
        %v407 = vsel %vm390, %v379, 0
        %v410 = vsel %vm390, %v380, 0
        %v413 = vsel %vm390, %v381, 0
        %v415 = vsel %vm390, %v387, 0
        %v417 = vsel %vm390, %v389, 0
        %419 = vmatpush.xpose.msra.mxu0 0.0
        %420 = vmatpush.xpose.msra.mxu0 0.0
        %421 = vmatpush.xpose.msra.mxu0 0.0
        %422 = vmatpush.xpose.msra.mxu0 0.0
        %423 = vmatpush.xpose.msra.mxu0 0.0
        %424 = vmatpush.xpose.msra.mxu0 0.0
        %425 = vmatpush.xpose.msra.mxu0 0.0
        %426 = vmatpush.xpose.msra.mxu0 0.0
        %427 = vmatpush.xpose.msra.mxu0 0.0
        %428 = vmatpush.xpose.msra.mxu0 0.0
        %429 = vmatpush.xpose.msra.mxu0 0.0
        %430 = vmatpush.xpose.msra.mxu0 0.0
        %431 = vmatpush.xpose.msra.mxu0 0.0
        %432 = vmatpush.xpose.msra.mxu0 0.0
        %433 = vmatpush.xpose.msra.mxu0 %v417
        %434 = vmatpush.xpose.msra.mxu0 %v415
        %435 = vmatmul.f32.gmra.mxu0 %v392
        %v436 = vpop.f32.mrf.mxu0
        %v437 = vadd.f32 %v384, %v436
        %438 = vmatmul.f32.gmra.mxu0 %v395
        %v439 = vpop.f32.mrf.mxu0
        %v440 = vadd.f32 %v384, %v439
        %441 = vmatmul.f32.gmra.mxu0 %v398
        %v442 = vpop.f32.mrf.mxu0
        %v443 = vadd.f32 %v384, %v442
        %444 = vmatmul.f32.gmra.mxu0 %v401
        %v445 = vpop.f32.mrf.mxu0
        %v446 = vadd.f32 %v384, %v445
        %447 = vmatmul.f32.gmra.mxu0 %v404
        %v448 = vpop.f32.mrf.mxu0
        %v449 = vadd.f32 %v384, %v448
        %450 = vmatmul.f32.gmra.mxu0 %v407
        %v451 = vpop.f32.mrf.mxu0
        %v452 = vadd.f32 %v384, %v451
        %453 = vmatmul.f32.gmra.mxu0 %v410
        %v454 = vpop.f32.mrf.mxu0
        %v455 = vadd.f32 %v384, %v454
        %456 = vmatmul.f32.gmra.mxu0 %v413
        %v457 = vpop.f32.mrf.mxu0
        %v458 = vadd.f32 %v384, %v457
        %459 = vdwg.mxu0
        %vm460 = vcmask 80896
        %v461 = vsel %vm460, %v437, -inf
        %462 = vmax.xlane.f32.xlu0 %v461
        %v463 = vpop.xlane.xlu0 %462
        %v464 = vsel %vm460, %v440, -inf
        %465 = vmax.xlane.f32.xlu0 %v464
        %v466 = vpop.xlane.xlu0 %465
        %v467 = vsel %vm460, %v443, -inf
        %468 = vmax.xlane.f32.xlu0 %v467
        %v469 = vpop.xlane.xlu0 %468
        %v470 = vsel %vm460, %v446, -inf
        %471 = vmax.xlane.f32.xlu0 %v470
        %v472 = vpop.xlane.xlu0 %471
        %v473 = vsel %vm460, %v449, -inf
        %474 = vmax.xlane.f32.xlu0 %v473
        %v475 = vpop.xlane.xlu0 %474
        %v476 = vsel %vm460, %v452, -inf
        %477 = vmax.xlane.f32.xlu0 %v476
        %v478 = vpop.xlane.xlu0 %477
        %v479 = vsel %vm460, %v455, -inf
        %480 = vmax.xlane.f32.xlu0 %v479
        %v481 = vpop.xlane.xlu0 %480
        %v482 = vsel %vm460, %v458, -inf
        %483 = vmax.xlane.f32.xlu0 %v482
        %v484 = vpop.xlane.xlu0 %483
        %v485 = vsub.f32 %v437, %v463
        %v486 = vsub.f32 %v440, %v466
        %v487 = vsub.f32 %v443, %v469
        %v488 = vsub.f32 %v446, %v472
        %v489 = vsub.f32 %v449, %v475
        %v490 = vsub.f32 %v452, %v478
        %v491 = vsub.f32 %v455, %v481
        %v492 = vsub.f32 %v458, %v484
        %v493 = vmul.f32 %v485, 1.442695
        %v494 = vpow.pop %v493
        %v495 = vmul.f32 %v486, 1.442695
        %v496 = vpow.pop %v495
        %v497 = vmul.f32 %v487, 1.442695
        %v498 = vpow.pop %v497
        %v499 = vmul.f32 %v488, 1.442695
        %v500 = vpow.pop %v499
        %v501 = vmul.f32 %v489, 1.442695
        %v502 = vpow.pop %v501
        %v503 = vmul.f32 %v490, 1.442695
        %v504 = vpow.pop %v503
        %v505 = vmul.f32 %v491, 1.442695
        %v506 = vpow.pop %v505
        %v507 = vmul.f32 %v492, 1.442695
        %v508 = vpow.pop %v507
        %v509 = vsel %vm460, %v494, 0.0
        %510 = vadd.xlane.f32.xlu0 %v509
        %v511 = vpop.xlane.xlu0 %510
        %v512 = vsel %vm460, %v496, 0.0
        %513 = vadd.xlane.f32.xlu0 %v512
        %v514 = vpop.xlane.xlu0 %513
        %v515 = vsel %vm460, %v498, 0.0
        %516 = vadd.xlane.f32.xlu0 %v515
        %v517 = vpop.xlane.xlu0 %516
        %v518 = vsel %vm460, %v500, 0.0
        %519 = vadd.xlane.f32.xlu0 %v518
        %v520 = vpop.xlane.xlu0 %519
        %v521 = vsel %vm460, %v502, 0.0
        %522 = vadd.xlane.f32.xlu0 %v521
        %v523 = vpop.xlane.xlu0 %522
        %v524 = vsel %vm460, %v504, 0.0
        %525 = vadd.xlane.f32.xlu0 %v524
        %v526 = vpop.xlane.xlu0 %525
        %v527 = vsel %vm460, %v506, 0.0
        %528 = vadd.xlane.f32.xlu0 %v527
        %v529 = vpop.xlane.xlu0 %528
        %v530 = vsel %vm460, %v508, 0.0
        %531 = vadd.xlane.f32.xlu0 %v530
        %v532 = vpop.xlane.xlu0 %531
        %v533 = vrcp.pop %v511
        %v534 = vrcp.pop %v514
        %v535 = vrcp.pop %v517
        %v536 = vrcp.pop %v520
        %v537 = vrcp.pop %v523
        %v538 = vrcp.pop %v526
        %v539 = vrcp.pop %v529
        %v540 = vrcp.pop %v532
        %v541 = vmul.f32 %v494, %v533
        %v542 = vmul.f32 %v496, %v534
        %v543 = vmul.f32 %v498, %v535
        %v544 = vmul.f32 %v500, %v536
        %v545 = vmul.f32 %v502, %v537
        %v546 = vmul.f32 %v504, %v538
        %v547 = vmul.f32 %v506, %v539
        %v548 = vmul.f32 %v508, %v540
        %549 = vrot.lane.b32.xlu0 %v355, 64
        %v550 = vpop.permute.xlu0 %549
        %551 = vrot.lane.b32.xlu0 %v358, 64
        %v552 = vpop.permute.xlu0 %551
        %v555 = vsel %vm460, %v541, 0
        %v558 = vsel %vm460, %v542, 0
        %v561 = vsel %vm460, %v543, 0
        %v564 = vsel %vm460, %v544, 0
        %v567 = vsel %vm460, %v545, 0
        %v570 = vsel %vm460, %v546, 0
        %v573 = vsel %vm460, %v547, 0
        %v576 = vsel %vm460, %v548, 0
        %vm578 = vcmask 1041408
        %v579 = vsel %vm578, %v552, 0
        %581 = vmatpush.msra.mxu0 0.0
        %582 = vmatpush.msra.mxu0 0.0
        %583 = vmatpush.msra.mxu0 0.0
        %584 = vmatpush.msra.mxu0 0.0
        %585 = vmatpush.msra.mxu0 0.0
        %586 = vmatpush.msra.mxu0 0.0
        %587 = vmatpush.msra.mxu0 0.0
        %588 = vmatpush.msra.mxu0 0.0
        %589 = vmatpush.msra.mxu0 0.0
        %590 = vmatpush.msra.mxu0 0.0
        %591 = vmatpush.msra.mxu0 0.0
        %592 = vmatpush.msra.mxu0 0.0
        %593 = vmatpush.msra.mxu0 0.0
        %594 = vmatpush.msra.mxu0 0.0
        %595 = vmatpush.msra.mxu0 %v579
        %596 = vmatpush.msra.mxu0 %v550
        %597 = vmatmul.f32.gmra.mxu0 %v555
        %v598 = vpop.f32.mrf.mxu0
        %v599 = vadd.f32 0.0, %v598
        %600 = vmatmul.f32.gmra.mxu0 %v558
        %v601 = vpop.f32.mrf.mxu0
        %v602 = vadd.f32 0.0, %v601
        %603 = vmatmul.f32.gmra.mxu0 %v561
        %v604 = vpop.f32.mrf.mxu0
        %v605 = vadd.f32 0.0, %v604
        %606 = vmatmul.f32.gmra.mxu0 %v564
        %v607 = vpop.f32.mrf.mxu0
        %v608 = vadd.f32 0.0, %v607
        %609 = vmatmul.f32.gmra.mxu0 %v567
        %v610 = vpop.f32.mrf.mxu0
        %v611 = vadd.f32 0.0, %v610
        %612 = vmatmul.f32.gmra.mxu0 %v570
        %v613 = vpop.f32.mrf.mxu0
        %v614 = vadd.f32 0.0, %v613
        %615 = vmatmul.f32.gmra.mxu0 %v573
        %v616 = vpop.f32.mrf.mxu0
        %v617 = vadd.f32 0.0, %v616
        %618 = vmatmul.f32.gmra.mxu0 %v576
        %v619 = vpop.f32.mrf.mxu0
        %v620 = vadd.f32 0.0, %v619
        %621 = vdwg.mxu0
        %v622 = vld [vmem:[%s3] sm:$0x1]
        %v623 = vperm.slane %v622, 0
        %v624 = vmul.f32 %v599, %v623
        %v625 = vld [vmem:[%s3 + $0x1] sm:$0x1]
        %v626 = vperm.slane %v625, 0
        %v627 = vmul.f32 %v602, %v626
        %v628 = vadd.f32 %v624, %v627
        %v629 = vld [vmem:[%s3 + $0x2] sm:$0x1]
        %v630 = vperm.slane %v629, 0
        %v631 = vmul.f32 %v605, %v630
        %v632 = vadd.f32 %v628, %v631
        %v633 = vld [vmem:[%s3 + $0x3] sm:$0x1]
        %v634 = vperm.slane %v633, 0
        %v635 = vmul.f32 %v608, %v634
        %v636 = vadd.f32 %v632, %v635
        %v637 = vld [vmem:[%s3 + $0x4] sm:$0x1]
        %v638 = vperm.slane %v637, 0
        %v639 = vmul.f32 %v611, %v638
        %v640 = vadd.f32 %v636, %v639
        %v641 = vld [vmem:[%s3 + $0x5] sm:$0x1]
        %v642 = vperm.slane %v641, 0
        %v643 = vmul.f32 %v614, %v642
        %v644 = vadd.f32 %v640, %v643
        %v645 = vld [vmem:[%s3 + $0x6] sm:$0x1]
        %v646 = vperm.slane %v645, 0
        %v647 = vmul.f32 %v617, %v646
        %v648 = vadd.f32 %v644, %v647
        %v649 = vld [vmem:[%s3 + $0x7] sm:$0x1]
        %v650 = vperm.slane %v649, 0
        %v651 = vmul.f32 %v620, %v650
        %v652 = vadd.f32 %v648, %v651
        %v653 = vld [vmem:[%s6] sm:$0xff]
        %v654 = vld [vmem:[%s6 + $0x8] sm:$0xff]
        %v655 = vld [vmem:[%s6 + $0x10] sm:$0xff]
        %v656 = vld [vmem:[%s6 + $0x18] sm:$0xff]
        %v657 = vld [vmem:[%s7] sm:$0x1]
        %v659 = vperm.slane %v657, 0
        %v662 = vsel %vm390, %v652, 0
        %664 = vmatpush.msra.mxu0 0.0
        %665 = vmatpush.msra.mxu0 0.0
        %666 = vmatpush.msra.mxu0 0.0
        %667 = vmatpush.msra.mxu0 0.0
        %668 = vmatpush.msra.mxu0 0.0
        %669 = vmatpush.msra.mxu0 0.0
        %670 = vmatpush.msra.mxu0 0.0
        %671 = vmatpush.msra.mxu0 0.0
        %672 = vmatpush.msra.mxu0 0.0
        %673 = vmatpush.msra.mxu0 0.0
        %674 = vmatpush.msra.mxu0 0.0
        %675 = vmatpush.msra.mxu0 0.0
        %676 = vmatpush.msra.mxu0 %v656
        %677 = vmatpush.msra.mxu0 %v655
        %678 = vmatpush.msra.mxu0 %v654
        %679 = vmatpush.msra.mxu0 %v653
        %680 = vmatmul.f32.gmra.mxu0 %v662
        %v681 = vpop.f32.mrf.mxu0
        %v682 = vadd.f32 %v659, %v681
        %683 = vdwg.mxu0
        %684 = vst.msk [vmem:[%s309] sm:$0xff] %vm390, %v682
        %s685 = sand.u32 %s208, 1
        %s686 = scalar_lea.sflag [#allocation3], %s685
        %s687 = sand.u32 %s208, 1
        %s688 = smul.addr %s687, 8
        %s689 = scalar_lea.vmem [#allocation2], %s688
        // Predicated region
        $region53: #{tpu_custom_call.1} parent=51 // pred_check
          %p690 = pneg %p218
        $region54: #{tpu_custom_call.1} parent=51 // pred_check_branch
          %692 = sbr.rel (%p690) target = $region56
        $region55: #{tpu_custom_call.1} parent=51 // pred_region
          %694 = vsyncadd %s686, 0
          %s695 = smul.addr %s22, 8
          %s696 = scalar_lea.hbm %s8, %s695
          %s698 = sshll.u32 %s689, 4
          %s699 = int_to_ptr.vmem [resolvable:$true] %s698
          %s700 = sshll.u32 %s696, 4
          %s701 = int_to_ptr.hbm [resolvable:$true] %s700
          %703 = dma.vmem_to_hbm [thread:$0]  %s699, 128, %s701, %s686
        $region56: #{tpu_custom_call.1} parent=51 // pred_fallthru
          _
      $region52: #{tpu_custom_call.1} parent=5 // pred_fallthru
        _
      %p704 = scmp.le.s32.totalorder 2, %s17
      // Predicated region
      $region57: #{tpu_custom_call.1} parent=5 // pred_check
        %p705 = pneg %p704
      $region58: #{tpu_custom_call.1} parent=5 // pred_check_branch
        %707 = sbr.rel (%p705) target = $region60
      $region59: #{tpu_custom_call.1} parent=5 // pred_region
        %s708 = ssub.s32 %s17, 2
        // Predicated region
        $region61: #{tpu_custom_call.1} parent=59 // pred_check
          %p709 = pneg %p224
        $region62: #{tpu_custom_call.1} parent=59 // pred_check_branch
          %711 = sbr.rel (%p709) target = $region64
        $region63: #{tpu_custom_call.1} parent=59 // pred_region
          %s712 = sand.u32 %s209, 1
          %s713 = scalar_lea.sflag [#allocation3], %s712
          %s714 = sand.u32 %s209, 1
          %s715 = smul.addr %s714, 8
          %s716 = scalar_lea.vmem [#allocation2], %s715
          %718 = dma.done %s713, 128
        $region64: #{tpu_custom_call.1} parent=59 // pred_fallthru
          _
      $region60: #{tpu_custom_call.1} parent=5 // pred_fallthru
        _
    $region6: #{tpu_custom_call.1} parent=1 // loop_footer
      %s21 = sadd.s32 1, %s17
    $region7: #{tpu_custom_call.1} parent=1 // loop_footer_branch
      %16 = sbr.rel target = $region3
    $region8: #{tpu_custom_call.1} parent=1 // loop_exit
      _
    %719 = vsyncpa [#allocation3], 1
    %s720 = scalar_lea.sflag [#allocation3], 1
    %721 = vsyncpa %s720, 1

</llo_original>
